<compile_context>
chip_gen: v5e
topology: v5e:2x2
jax: 0.10.0
libtpu: 0.0.40
codegen_flags: <defaults>
</compile_context>

<pallas_src>
import math

import jax
import jax.numpy as jnp
from jax.experimental import pallas as pl
from jax.experimental.pallas import tpu as pltpu


# ---------------------------------------------------------------------------
# Kernel: transpose the last two axes of a (TB, TL, TD) tile -> (TB, TD, TL).
# One batched XLU permute over the whole tile.
# ---------------------------------------------------------------------------
def _transpose_kernel(x_ref, o_ref):
    o_ref[...] = jnp.swapaxes(x_ref[...], 1, 2)


def _pick_tile(dim: int, target: int) -> int:
    """Tile size along one of the last-two axes.

    * dim <= target: use the full dimension (full-dim escape hatch of the
      (8,128) rule) -> single tile, no ragged edges.
    * dim > target: prefer a 128-multiple that evenly divides dim (no partial
      tiles / masked stores); otherwise fall back to the aligned target.
    """
    if dim <= target:
        return int(dim)
    best = (target // 128) * 128
    for t in range(best, 127, -128):
        if dim % t == 0:
            return t
    return best


def transpose_last_two(x: jax.Array) -> jax.Array:
    """Swap the last two axes of `x` (rank >= 2) with a Pallas TPU kernel."""
    *lead, L, D = x.shape
    B = math.prod(lead) if lead else 1

    # Degenerate or lane-sparse shapes: XLA's fused transpose wins (output
    # lane width < 128 would force masked partial stores + tiny tiles).
    if B == 0 or L == 0 or D == 0 or min(L, D) < 128:
        return jnp.swapaxes(x, -1, -2)

    x3 = x.reshape(B, L, D)
    itemsize = jnp.dtype(x.dtype).itemsize

    # Output lane axis (TL) gets the larger target -> lane-dense, long-burst
    # output stores; TD is the input lane axis (still a 128 multiple).
    TL = _pick_tile(L, target=1024)   # input sublane / output lane axis
    TD = _pick_tile(D, target=512)    # input lane / output sublane axis

    n_l = pl.cdiv(L, TL)
    n_d = pl.cdiv(D, TD)
    tile_bytes = TL * TD * itemsize

    # Pack several batch elements per grid step only when the per-batch tile
    # is small (amortize the ~0.35 us per-step overhead), TB divides B, and
    # the grid does not collapse below the unpacked step count (keep work for
    # both TensorCores on v7x).
    TB = 1
    if B > 1 and tile_bytes < (1 << 20):
        min_steps = min(4, B * n_l * n_d)
        cap = int(min(B, 8, max(1, (1 << 20) // tile_bytes)))
        for t in range(cap, 1, -1):
            if B % t == 0 and pl.cdiv(B, t) * n_l * n_d >= min_steps:
                TB = t
                break

    grid = (pl.cdiv(B, TB), n_l, n_d)

    block_bytes = TB * tile_bytes
    # double-buffered input + double-buffered output + transpose temp + headroom
    vmem_limit = int(min(48 << 20, 6 * block_bytes + (8 << 20)))

    out3 = pl.pallas_call(
        _transpose_kernel,
        out_shape=jax.ShapeDtypeStruct((B, D, L), x.dtype),
        grid_spec=pltpu.PrefetchScalarGridSpec(
            num_scalar_prefetch=0,
            grid=grid,
            in_specs=[pl.BlockSpec((TB, TL, TD), lambda b, i, j: (b, i, j))],
            out_specs=pl.BlockSpec((TB, TD, TL), lambda b, i, j: (b, j, i)),
        ),
        compiler_params=pltpu.CompilerParams(
            dimension_semantics=("parallel", "parallel", "parallel"),
            vmem_limit_bytes=vmem_limit,
        ),
        cost_estimate=pl.CostEstimate(
            flops=0,
            transcendentals=0,
            bytes_accessed=2 * B * L * D * itemsize,
        ),
    )(x3)

    return out3.reshape(*lead, D, L)


class Transpose:
    """Mirror of the PyTorch module: Transpose(*dims, contiguous=False).

    Swaps of the last two axes (the configuration used in CrossAD's EncDec,
    i.e. Transpose(1, 2) on rank-3 tensors) are routed through the Pallas
    kernel when the shape is lane-dense; `contiguous` is a no-op in JAX
    (arrays are always dense).
    """

    def __init__(self, *dims, contiguous=False):
        self.dims = dims
        self.contiguous = contiguous  # no-op for JAX arrays

    def __call__(self, x):
        d0, d1 = self.dims
        d0 %= x.ndim
        d1 %= x.ndim
        if x.ndim >= 2 and {d0, d1} == {x.ndim - 2, x.ndim - 1} and x.size > 0:
            return transpose_last_two(x)
        # TODO(synk): non-minor-axis / other-rank transposes fall back to XLA.
        perm = list(range(x.ndim))
        perm[d0], perm[d1] = perm[d1], perm[d0]
        return jnp.transpose(x, perm)


if __name__ == "__main__":
    module = Transpose(1, 2, contiguous=True)

    # Small shape matching the module's usage: (batch=2, seq=8, hidden=32).
    # Lane width < 128 -> routed to the XLA fallback (by design).
    x = jax.random.normal(jax.random.PRNGKey(0), (2, 8, 32), dtype=jnp.float32)
    y = jax.block_until_ready(module(x))
    assert y.shape == (2, 32, 8), y.shape
    assert y.dtype == x.dtype
    assert bool(jnp.array_equal(y, jnp.transpose(x, (0, 2, 1))))

    # Pallas path: full-dim (ragged-free) single tile per batch element.
    x2 = jax.random.normal(jax.random.PRNGKey(1), (2, 200, 384), dtype=jnp.float32)
    y2 = jax.block_until_ready(module(x2))
    assert y2.shape == (2, 384, 200), y2.shape
    assert bool(jnp.array_equal(y2, jnp.transpose(x2, (0, 2, 1))))

    # Pallas path: multi-tile, lane-dense (TD divisor search: 1280 -> 256).
    x3 = jax.random.normal(jax.random.PRNGKey(2), (1, 512, 1280), dtype=jnp.float32)
    y3 = jax.block_until_ready(module(x3))
    assert y3.shape == (1, 1280, 512), y3.shape
    assert bool(jnp.array_equal(y3, jnp.transpose(x3, (0, 2, 1))))

    print("KERNEL_OK")
</pallas_src>

<mosaic_0001>
module attributes {stable_mosaic.version = 11 : i64} {
  func.func @_transpose_kernel(%arg0: i32, %arg1: i32, %arg2: i32, %arg3: memref<1x200x384xf32, #tpu.memory_space<vmem>>, %arg4: memref<1x384x200xf32, #tpu.memory_space<vmem>>) attributes {dimension_semantics = [#tpu.dimension_semantics<parallel>, #tpu.dimension_semantics<parallel>, #tpu.dimension_semantics<parallel>], iteration_bounds = array<i64: 2, 1, 1>, scalar_prefetch = 0 : i64, scratch_operands = 0 : i64, tpu.core_type = #tpu.core_type<tc>, window_params = [{transform_indices = @transform_0, window_bounds = array<i64: 1, 200, 384>}, {transform_indices = @transform_1, window_bounds = array<i64: 1, 384, 200>}]} {
    %c0 = arith.constant 0 : index
    %c0_0 = arith.constant 0 : index
    %c0_1 = arith.constant 0 : index
    %0 = vector.load %arg3[%c0, %c0_0, %c0_1] : memref<1x200x384xf32, #tpu.memory_space<vmem>>, vector<1x200x384xf32>
    %1 = tpu.transpose %0, [0, 2, 1] : vector<1x200x384xf32> -> vector<1x384x200xf32>
    %c0_2 = arith.constant 0 : index
    %c0_3 = arith.constant 0 : index
    %c0_4 = arith.constant 0 : index
    %2 = vector.load %arg4[%c0_2, %c0_3, %c0_4] : memref<1x384x200xf32, #tpu.memory_space<vmem>>, vector<1x384x200xf32>
    tpu.vector_store %arg4[%c0_2, %c0_3, %c0_4], %1 {strides = array<i32>} : memref<1x384x200xf32, #tpu.memory_space<vmem>>, vector<1x384x200xf32>,
    return
  }
  func.func @transform_0(%arg0: i32, %arg1: i32, %arg2: i32) -> (i32, i32, i32) {
    %c0_i32 = arith.constant 0 : i32
    return %arg0, %arg1, %arg2 : i32, i32, i32
  }
  func.func @transform_1(%arg0: i32, %arg1: i32, %arg2: i32) -> (i32, i32, i32) {
    %c0_i32 = arith.constant 0 : i32
    return %arg0, %arg2, %arg1 : i32, i32, i32
  }
}

</mosaic_0001>

<llo_original>
// kernel: tpu_custom_call.1
$region0: #{tpu_custom_call.1}
  #allocation0 [shape = 'u32[]', space=smem, size = 0x4, offset = 0x4, fixed_abs, tag = 'smem constant byte address 0x4 - core index']
  #allocation1 [shape = 'u32[72,128]{1,0:T(1,128)}', space=vmem, size = 0x9000, scoped, tag = 'internal scratch']
  %s0 = inlined_call_operand.hbm [shape: f32[2,200,384], index: 0, kind: input, shape index: {}]
  %s1 = inlined_call_operand.vmem [shape: f32[2,384,200], index: 1, kind: output, shape index: {}]
  %s2 = sld [smem:[#allocation0]]
  $region41: #{tpu_custom_call.1} parent=0
    _
  %s4 = ssub.s32 1, %s2
  %s5 = scalar_select 0, %s4, %s2
  $region1: #{tpu_custom_call.1} parent=0
    #allocation2 [shape = 'u8[614400]{0}', space=vmem, size = 0x96000, scoped, tag = 'input window, operand 0']
    #allocation3 [shape = 's32[2]{0}', space=sflag, size = 0x8, scoped, tag = 'scoped memory for tpu_custom_call.1']
    %6 = vsyncpa [#allocation3], 0
    %s7 = scalar_lea.sflag [#allocation3], 1
    %8 = vsyncpa %s7, 0
    loop: start=0, step=1, limit=4
    $region2: #{tpu_custom_call.1} parent=1 // loop_pre_header
      _
    $region3: #{tpu_custom_call.1} parent=1 // loop_header
      %s10 = sphi 0, %s14
      %p11 = scmp.ge.s32.totalorder %s10, 4
      %s17 = sphi 0, %s36
      %s18 = sphi 0, %s32
      %s19 = sphi 0, %s28
      %s20 = sphi 0, %s17
      %s21 = sphi 0, %s18
      %s22 = sphi 0, %s19
      %s23 = sphi 0, %s20
      %s24 = sphi 0, %s21
      %s25 = sphi 0, %s22
      %s43 = sphi 0, %s45
      %s46 = sphi 0, %s43
      %s47 = sphi 0, %s46
      %s63 = sphi 0, %s47
      %s73 = sphi 0, %s75
      %s76 = sphi 0, %s73
      %s77 = sphi 0, %s76
      %s93 = sphi 0, %s77
    $region4: #{tpu_custom_call.1} parent=1 // loop_header_branch
      %13 = sbr.rel (%p11) target = $region8
    $region5: #{tpu_custom_call.1} parent=1 // loop_body
      %s15 = ssub.s32 %s10, 1
      %s16 = ssub.s32 %s10, 2
      %s26 = sadd.s32 1, %s19
      %p27 = scmp.ge.s32.totalorder %s26, 1
      %s28 = scalar_select %p27, 0, %s26
      %s29 = sadd.s32 1, %s18
      %s30 = scalar_select %p27, %s29, %s18
      %p31 = scmp.ge.s32.totalorder %s30, 1
      %s32 = scalar_select %p31, 0, %s30
      %s33 = sadd.s32 1, %s17
      %s34 = scalar_select %p31, %s33, %s17
      %p35 = scmp.ge.s32.totalorder %s34, 2
      %s36 = scalar_select %p35, 0, %s34
      %s37 = ssub.s32 %s17, %s36
      %s38 = ssub.s32 %s18, %s32
      %s39 = sor.u32 %s37, %s38
      %s40 = ssub.s32 %s19, %s28
      %s41 = sor.u32 %s39, %s40
      %p42 = scmp.eq.s32.totalorder %s41, 0
      %s44 = sadd.s32 %s43, 1
      %s45 = scalar_select %p42, %s43, %s44
      %p48 = pneg %p42
      %p49 = scmp.eq.s32.totalorder %s10, 1
      %p50 = por %p48, %p49
      %p51 = scmp.ne.s32.totalorder %s43, %s46
      %p52 = scmp.eq.s32.totalorder %s10, 0
      %p53 = por %p51, %p52
      %p54 = scmp.ne.s32.totalorder %s43, %s46
      %p55 = scmp.eq.s32.totalorder %s15, 1
      %p56 = por %p54, %p55
      %p57 = scmp.ne.s32.totalorder %s46, %s47
      %p58 = scmp.eq.s32.totalorder %s15, 0
      %p59 = por %p57, %p58
      %p60 = scmp.ne.s32.totalorder %s46, %s47
      %p61 = scmp.eq.s32.totalorder %s16, 1
      %p62 = por %p60, %p61
      %p64 = scmp.ne.s32.totalorder %s47, %s63
      %p65 = scmp.eq.s32.totalorder %s16, 0
      %p66 = por %p64, %p65
      %s67 = ssub.s32 %s17, %s36
      %s68 = ssub.s32 %s19, %s28
      %s69 = sor.u32 %s67, %s68
      %s70 = ssub.s32 %s18, %s32
      %s71 = sor.u32 %s69, %s70
      %p72 = scmp.eq.s32.totalorder %s71, 0
      %s74 = sadd.s32 %s73, 1
      %s75 = scalar_select %p72, %s73, %s74
      %p78 = pneg %p72
      %p79 = scmp.eq.s32.totalorder %s10, 1
      %p80 = por %p78, %p79
      %p81 = scmp.ne.s32.totalorder %s73, %s76
      %p82 = scmp.eq.s32.totalorder %s10, 0
      %p83 = por %p81, %p82
      %p84 = scmp.ne.s32.totalorder %s73, %s76
      %p85 = scmp.eq.s32.totalorder %s15, 1
      %p86 = por %p84, %p85
      %p87 = scmp.ne.s32.totalorder %s76, %s77
      %p88 = scmp.eq.s32.totalorder %s15, 0
      %p89 = por %p87, %p88
      %p90 = scmp.ne.s32.totalorder %s76, %s77
      %p91 = scmp.eq.s32.totalorder %s16, 1
      %p92 = por %p90, %p91
      %p94 = scmp.ne.s32.totalorder %s77, %s93
      %p95 = scmp.eq.s32.totalorder %s16, 0
      %p96 = por %p94, %p95
      %p97 = scmp.le.s32.totalorder 1, %s10
      %p98 = scmp.lt.s32.totalorder %s10, 3
      %p99 = pnand %p97, %p98
      %p100 = pneg %p99
      // Predicated region
      $region9: #{tpu_custom_call.1} parent=5 // pred_check
        _
      $region10: #{tpu_custom_call.1} parent=5 // pred_check_branch
        %102 = sbr.rel (%p99) target = $region12
      $region11: #{tpu_custom_call.1} parent=5 // pred_region
        %s103 = ssub.s32 %s10, 1
      $region12: #{tpu_custom_call.1} parent=5 // pred_fallthru
        _
      %p104 = scmp.lt.s32.totalorder %s10, 2
      // Predicated region
      $region13: #{tpu_custom_call.1} parent=5 // pred_check
        %p105 = pneg %p104
      $region14: #{tpu_custom_call.1} parent=5 // pred_check_branch
        %107 = sbr.rel (%p105) target = $region16
      $region15: #{tpu_custom_call.1} parent=5 // pred_region
        // Predicated region
        $region17: #{tpu_custom_call.1} parent=15 // pred_check
          %p108 = pneg %p53
        $region18: #{tpu_custom_call.1} parent=15 // pred_check_branch
          %110 = sbr.rel (%p108) target = $region20
        $region19: #{tpu_custom_call.1} parent=15 // pred_region
          %s111 = sand.u32 %s43, 1
          %s112 = scalar_lea.sflag [#allocation3], %s111
          %s113 = sand.u32 %s43, 1
          %s114 = smul.addr %s113, 600
          %s115 = scalar_lea.vmem [#allocation2], %s114
          %s116 = smul.u32 25, %s18
          %s117 = smul.u32 3, %s19
          %119 = vsyncadd %s112, 0
          %s120 = smul.addr %s116, 3
          %s121 = sadd.s32 %s117, %s120
          %s122 = smul.addr %s17, 75
          %s123 = sadd.s32 %s121, %s122
          %s124 = smul.addr %s123, 8
          %s125 = scalar_lea.hbm %s0, %s124
          %s126 = sshll.u32 %s125, 4
          %s127 = int_to_ptr.hbm [resolvable:$true] %s126
          %s128 = sshll.u32 %s115, 4
          %s129 = int_to_ptr.vmem [resolvable:$true] %s128
          %134 = dma.hbm_to_vmem [thread:$0]  %s127, 9600, %s129, %s112, 384, 384, 24
        $region20: #{tpu_custom_call.1} parent=15 // pred_fallthru
          _
      $region16: #{tpu_custom_call.1} parent=5 // pred_fallthru
        _
      %p135 = scmp.le.s32.totalorder 1, %s10
      %p136 = scmp.lt.s32.totalorder %s10, 3
      %p137 = pnand %p135, %p136
      %p138 = pneg %p137
      // Predicated region
      $region21: #{tpu_custom_call.1} parent=5 // pred_check
        _
      $region22: #{tpu_custom_call.1} parent=5 // pred_check_branch
        %140 = sbr.rel (%p137) target = $region24
      $region23: #{tpu_custom_call.1} parent=5 // pred_region
        %s141 = ssub.s32 %s10, 1
        %s142 = sand.u32 %s46, 1
        %s143 = scalar_lea.sflag [#allocation3], %s142
        %s144 = sand.u32 %s46, 1
        %s145 = smul.addr %s144, 600
        %s146 = scalar_lea.vmem [#allocation2], %s145
        // Predicated region
        $region25: #{tpu_custom_call.1} parent=23 // pred_check
          %p147 = pneg %p59
        $region26: #{tpu_custom_call.1} parent=23 // pred_check_branch
          %149 = sbr.rel (%p147) target = $region28
        $region27: #{tpu_custom_call.1} parent=23 // pred_region
          %151 = dma.done %s143, 9600
        $region28: #{tpu_custom_call.1} parent=23 // pred_fallthru
          _
        %s152 = sand.u32 %s46, 1
        %s153 = scalar_lea.sflag [#allocation3], %s152
        %s154 = sand.u32 %s46, 1
        %s155 = smul.addr %s154, 600
        %s156 = scalar_lea.vmem [#allocation2], %s155
        %p157 = pneg %p59
        %p158 = pneg %p56
        %p159 = pneg %p89
        %p160 = pneg %p86
        %s161 = smul.u32 48, %s22
        %s162 = smul.u32 2, %s21
        %p163 = scmp.lt.s32.totalorder %s20, 1
        %s164 = scalar_select %p163, %s20, 1
        %p165 = scmp.lt.s32.totalorder %s161, 47
        %s166 = scalar_select %p165, %s161, 47
        %p167 = scmp.lt.s32.totalorder %s162, 1
        %s168 = scalar_select %p167, %s162, 1
        %s169 = smul.addr %s166, 2
        %s170 = sadd.s32 %s168, %s169
        %s171 = smul.addr %s164, 96
        %s172 = sadd.s32 %s170, %s171
        %s173 = smul.addr %s172, 8
        %s174 = scalar_lea.vmem %s1, %s173
        %s175 = smul.u32 25, %s21
        %s176 = smul.u32 3, %s22
        %s177 = smul.u32 48, %s22
        %s178 = smul.u32 2, %s21
        %p179 = scmp.lt.s32.totalorder %s20, 1
        %s180 = scalar_select %p179, %s20, 1
        %p181 = scmp.lt.s32.totalorder %s177, 47
        %s182 = scalar_select %p181, %s177, 47
        %p183 = scmp.lt.s32.totalorder %s178, 1
        %s184 = scalar_select %p183, %s178, 1
        %s185 = smul.addr %s182, 2
        %s186 = sadd.s32 %s184, %s185
        %s187 = smul.addr %s180, 96
        %s188 = sadd.s32 %s186, %s187
        %s189 = smul.addr %s188, 8
        %s190 = scalar_lea.vmem %s1, %s189
        %s191 = smul.u32 48, %s22
        %s192 = smul.u32 2, %s21
        %v193 = vld [vmem:[%s146] sm:$0xff]
        %v194 = vld [vmem:[%s146 + $0x8] sm:$0xff]
        %v195 = vld [vmem:[%s146 + $0x10] sm:$0xff]
        %v196 = vld [vmem:[%s146 + $0x18] sm:$0xff]
        %v197 = vld [vmem:[%s146 + $0x20] sm:$0xff]
        %v198 = vld [vmem:[%s146 + $0x28] sm:$0xff]
        %v199 = vld [vmem:[%s146 + $0x30] sm:$0xff]
        %v200 = vld [vmem:[%s146 + $0x38] sm:$0xff]
        %v201 = vld [vmem:[%s146 + $0x40] sm:$0xff]
        %v202 = vld [vmem:[%s146 + $0x48] sm:$0xff]
        %v203 = vld [vmem:[%s146 + $0x50] sm:$0xff]
        %v204 = vld [vmem:[%s146 + $0x58] sm:$0xff]
        %v205 = vld [vmem:[%s146 + $0x60] sm:$0xff]
        %v206 = vld [vmem:[%s146 + $0x68] sm:$0xff]
        %v207 = vld [vmem:[%s146 + $0x70] sm:$0xff]
        %v208 = vld [vmem:[%s146 + $0x78] sm:$0xff]
        %v209 = vld [vmem:[%s146 + $0x80] sm:$0xff]
        %v210 = vld [vmem:[%s146 + $0x88] sm:$0xff]
        %v211 = vld [vmem:[%s146 + $0x90] sm:$0xff]
        %v212 = vld [vmem:[%s146 + $0x98] sm:$0xff]
        %v213 = vld [vmem:[%s146 + $0xa0] sm:$0xff]
        %v214 = vld [vmem:[%s146 + $0xa8] sm:$0xff]
        %v215 = vld [vmem:[%s146 + $0xb0] sm:$0xff]
        %v216 = vld [vmem:[%s146 + $0xb8] sm:$0xff]
        %v217 = vld [vmem:[%s146 + $0xc0] sm:$0xff]
        %v218 = vld [vmem:[%s146 + $0xc8] sm:$0xff]
        %v219 = vld [vmem:[%s146 + $0xd0] sm:$0xff]
        %v220 = vld [vmem:[%s146 + $0xd8] sm:$0xff]
        %v221 = vld [vmem:[%s146 + $0xe0] sm:$0xff]
        %v222 = vld [vmem:[%s146 + $0xe8] sm:$0xff]
        %v223 = vld [vmem:[%s146 + $0xf0] sm:$0xff]
        %v224 = vld [vmem:[%s146 + $0xf8] sm:$0xff]
        %v225 = vld [vmem:[%s146 + $0x100] sm:$0xff]
        %v226 = vld [vmem:[%s146 + $0x108] sm:$0xff]
        %v227 = vld [vmem:[%s146 + $0x110] sm:$0xff]
        %v228 = vld [vmem:[%s146 + $0x118] sm:$0xff]
        %v229 = vld [vmem:[%s146 + $0x120] sm:$0xff]
        %v230 = vld [vmem:[%s146 + $0x128] sm:$0xff]
        %v231 = vld [vmem:[%s146 + $0x130] sm:$0xff]
        %v232 = vld [vmem:[%s146 + $0x138] sm:$0xff]
        %v233 = vld [vmem:[%s146 + $0x140] sm:$0xff]
        %v234 = vld [vmem:[%s146 + $0x148] sm:$0xff]
        %v235 = vld [vmem:[%s146 + $0x150] sm:$0xff]
        %v236 = vld [vmem:[%s146 + $0x158] sm:$0xff]
        %v237 = vld [vmem:[%s146 + $0x160] sm:$0xff]
        %v238 = vld [vmem:[%s146 + $0x168] sm:$0xff]
        %v239 = vld [vmem:[%s146 + $0x170] sm:$0xff]
        %v240 = vld [vmem:[%s146 + $0x178] sm:$0xff]
        %v241 = vld [vmem:[%s146 + $0x180] sm:$0xff]
        %v242 = vld [vmem:[%s146 + $0x188] sm:$0xff]
        %v243 = vld [vmem:[%s146 + $0x190] sm:$0xff]
        %v244 = vld [vmem:[%s146 + $0x198] sm:$0xff]
        %v245 = vld [vmem:[%s146 + $0x1a0] sm:$0xff]
        %v246 = vld [vmem:[%s146 + $0x1a8] sm:$0xff]
        %v247 = vld [vmem:[%s146 + $0x1b0] sm:$0xff]
        %v248 = vld [vmem:[%s146 + $0x1b8] sm:$0xff]
        %v249 = vld [vmem:[%s146 + $0x1c0] sm:$0xff]
        %v250 = vld [vmem:[%s146 + $0x1c8] sm:$0xff]
        %v251 = vld [vmem:[%s146 + $0x1d0] sm:$0xff]
        %v252 = vld [vmem:[%s146 + $0x1d8] sm:$0xff]
        %v253 = vld [vmem:[%s146 + $0x1e0] sm:$0xff]
        %v254 = vld [vmem:[%s146 + $0x1e8] sm:$0xff]
        %v255 = vld [vmem:[%s146 + $0x1f0] sm:$0xff]
        %v256 = vld [vmem:[%s146 + $0x1f8] sm:$0xff]
        %v257 = vld [vmem:[%s146 + $0x200] sm:$0xff]
        %v258 = vld [vmem:[%s146 + $0x208] sm:$0xff]
        %v259 = vld [vmem:[%s146 + $0x210] sm:$0xff]
        %v260 = vld [vmem:[%s146 + $0x218] sm:$0xff]
        %v261 = vld [vmem:[%s146 + $0x220] sm:$0xff]
        %v262 = vld [vmem:[%s146 + $0x228] sm:$0xff]
        %v263 = vld [vmem:[%s146 + $0x230] sm:$0xff]
        %v264 = vld [vmem:[%s146 + $0x238] sm:$0xff]
        %v265 = vld [vmem:[%s146 + $0x240] sm:$0xff]
        %v266 = vld [vmem:[%s146 + $0x248] sm:$0xff]
        %v267 = vld [vmem:[%s146 + $0x250] sm:$0xff]
        %268 = vxpose.xlu0.b32.start [1/16] %v193, 128
        %269 = vxpose.xlu0.b32.cont [2/16] %v196, 128
        %270 = vxpose.xlu0.b32.cont [3/16] %v199, 128
        %271 = vxpose.xlu0.b32.cont [4/16] %v202, 128
        %272 = vxpose.xlu0.b32.cont [5/16] %v205, 128
        %273 = vxpose.xlu0.b32.cont [6/16] %v208, 128
        %274 = vxpose.xlu0.b32.cont [7/16] %v211, 128
        %275 = vxpose.xlu0.b32.cont [8/16] %v214, 128
        %276 = vxpose.xlu0.b32.cont [9/16] %v217, 128
        %277 = vxpose.xlu0.b32.cont [10/16] %v220, 128
        %278 = vxpose.xlu0.b32.cont [11/16] %v223, 128
        %279 = vxpose.xlu0.b32.cont [12/16] %v226, 128
        %280 = vxpose.xlu0.b32.cont [13/16] %v229, 128
        %281 = vxpose.xlu0.b32.cont [14/16] %v232, 128
        %282 = vxpose.xlu0.b32.cont [15/16] %v235, 128
        %283 = vxpose.xlu0.b32.end [16/16] %v238, 128
        %v284 = vpop.trf.xlu0
        %v285 = vpop.trf.xlu0
        %v286 = vpop.trf.xlu0
        %v287 = vpop.trf.xlu0
        %v288 = vpop.trf.xlu0
        %v289 = vpop.trf.xlu0
        %v290 = vpop.trf.xlu0
        %v291 = vpop.trf.xlu0
        %v292 = vpop.trf.xlu0
        %v293 = vpop.trf.xlu0
        %v294 = vpop.trf.xlu0
        %v295 = vpop.trf.xlu0
        %v296 = vpop.trf.xlu0
        %v297 = vpop.trf.xlu0
        %v298 = vpop.trf.xlu0
        %v299 = vpop.trf.xlu0
        %300 = vxpose.xlu0.b32.start [1/16] %v194, 128
        %301 = vxpose.xlu0.b32.cont [2/16] %v197, 128
        %302 = vxpose.xlu0.b32.cont [3/16] %v200, 128
        %303 = vxpose.xlu0.b32.cont [4/16] %v203, 128
        %304 = vxpose.xlu0.b32.cont [5/16] %v206, 128
        %305 = vxpose.xlu0.b32.cont [6/16] %v209, 128
        %306 = vxpose.xlu0.b32.cont [7/16] %v212, 128
        %307 = vxpose.xlu0.b32.cont [8/16] %v215, 128
        %308 = vxpose.xlu0.b32.cont [9/16] %v218, 128
        %309 = vxpose.xlu0.b32.cont [10/16] %v221, 128
        %310 = vxpose.xlu0.b32.cont [11/16] %v224, 128
        %311 = vxpose.xlu0.b32.cont [12/16] %v227, 128
        %312 = vxpose.xlu0.b32.cont [13/16] %v230, 128
        %313 = vxpose.xlu0.b32.cont [14/16] %v233, 128
        %314 = vxpose.xlu0.b32.cont [15/16] %v236, 128
        %315 = vxpose.xlu0.b32.end [16/16] %v239, 128
        %v316 = vpop.trf.xlu0
        %v317 = vpop.trf.xlu0
        %v318 = vpop.trf.xlu0
        %v319 = vpop.trf.xlu0
        %v320 = vpop.trf.xlu0
        %v321 = vpop.trf.xlu0
        %v322 = vpop.trf.xlu0
        %v323 = vpop.trf.xlu0
        %v324 = vpop.trf.xlu0
        %v325 = vpop.trf.xlu0
        %v326 = vpop.trf.xlu0
        %v327 = vpop.trf.xlu0
        %v328 = vpop.trf.xlu0
        %v329 = vpop.trf.xlu0
        %v330 = vpop.trf.xlu0
        %v331 = vpop.trf.xlu0
        %332 = vxpose.xlu0.b32.start [1/16] %v195, 128
        %333 = vxpose.xlu0.b32.cont [2/16] %v198, 128
        %334 = vxpose.xlu0.b32.cont [3/16] %v201, 128
        %335 = vxpose.xlu0.b32.cont [4/16] %v204, 128
        %336 = vxpose.xlu0.b32.cont [5/16] %v207, 128
        %337 = vxpose.xlu0.b32.cont [6/16] %v210, 128
        %338 = vxpose.xlu0.b32.cont [7/16] %v213, 128
        %339 = vxpose.xlu0.b32.cont [8/16] %v216, 128
        %340 = vxpose.xlu0.b32.cont [9/16] %v219, 128
        %341 = vxpose.xlu0.b32.cont [10/16] %v222, 128
        %342 = vxpose.xlu0.b32.cont [11/16] %v225, 128
        %343 = vxpose.xlu0.b32.cont [12/16] %v228, 128
        %344 = vxpose.xlu0.b32.cont [13/16] %v231, 128
        %345 = vxpose.xlu0.b32.cont [14/16] %v234, 128
        %346 = vxpose.xlu0.b32.cont [15/16] %v237, 128
        %347 = vxpose.xlu0.b32.end [16/16] %v240, 128
        %v348 = vpop.trf.xlu0
        %v349 = vpop.trf.xlu0
        %v350 = vpop.trf.xlu0
        %v351 = vpop.trf.xlu0
        %v352 = vpop.trf.xlu0
        %v353 = vpop.trf.xlu0
        %v354 = vpop.trf.xlu0
        %v355 = vpop.trf.xlu0
        %v356 = vpop.trf.xlu0
        %v357 = vpop.trf.xlu0
        %v358 = vpop.trf.xlu0
        %v359 = vpop.trf.xlu0
        %v360 = vpop.trf.xlu0
        %v361 = vpop.trf.xlu0
        %v362 = vpop.trf.xlu0
        %v363 = vpop.trf.xlu0
        %364 = vxpose.xlu0.b32.start [1/16] %v241, 128
        %365 = vxpose.xlu0.b32.cont [2/16] %v244, 128
        %366 = vxpose.xlu0.b32.cont [3/16] %v247, 128
        %367 = vxpose.xlu0.b32.cont [4/16] %v250, 128
        %368 = vxpose.xlu0.b32.cont [5/16] %v253, 128
        %369 = vxpose.xlu0.b32.cont [6/16] %v256, 128
        %370 = vxpose.xlu0.b32.cont [7/16] %v259, 128
        %371 = vxpose.xlu0.b32.cont [8/16] %v262, 128
        %372 = vxpose.xlu0.b32.cont [9/16] %v265, 128
        %373 = vxpose.xlu0.b32.cont [10/16] 0.0, 128
        %374 = vxpose.xlu0.b32.cont [11/16] 0.0, 128
        %375 = vxpose.xlu0.b32.cont [12/16] 0.0, 128
        %376 = vxpose.xlu0.b32.cont [13/16] 0.0, 128
        %377 = vxpose.xlu0.b32.cont [14/16] 0.0, 128
        %378 = vxpose.xlu0.b32.cont [15/16] 0.0, 128
        %379 = vxpose.xlu0.b32.end [16/16] 0.0, 128
        %v380 = vpop.trf.xlu0
        %v381 = vpop.trf.xlu0
        %v382 = vpop.trf.xlu0
        %v383 = vpop.trf.xlu0
        %v384 = vpop.trf.xlu0
        %v385 = vpop.trf.xlu0
        %v386 = vpop.trf.xlu0
        %v387 = vpop.trf.xlu0
        %v388 = vpop.trf.xlu0
        %v389 = vpop.trf.xlu0
        %v390 = vpop.trf.xlu0
        %v391 = vpop.trf.xlu0
        %v392 = vpop.trf.xlu0
        %v393 = vpop.trf.xlu0
        %v394 = vpop.trf.xlu0
        %v395 = vpop.trf.xlu0
        %396 = vxpose.xlu0.b32.start [1/16] %v242, 128
        %397 = vxpose.xlu0.b32.cont [2/16] %v245, 128
        %398 = vxpose.xlu0.b32.cont [3/16] %v248, 128
        %399 = vxpose.xlu0.b32.cont [4/16] %v251, 128
        %400 = vxpose.xlu0.b32.cont [5/16] %v254, 128
        %401 = vxpose.xlu0.b32.cont [6/16] %v257, 128
        %402 = vxpose.xlu0.b32.cont [7/16] %v260, 128
        %403 = vxpose.xlu0.b32.cont [8/16] %v263, 128
        %404 = vxpose.xlu0.b32.cont [9/16] %v266, 128
        %405 = vxpose.xlu0.b32.cont [10/16] 0.0, 128
        %406 = vxpose.xlu0.b32.cont [11/16] 0.0, 128
        %407 = vxpose.xlu0.b32.cont [12/16] 0.0, 128
        %408 = vxpose.xlu0.b32.cont [13/16] 0.0, 128
        %409 = vxpose.xlu0.b32.cont [14/16] 0.0, 128
        %410 = vxpose.xlu0.b32.cont [15/16] 0.0, 128
        %411 = vxpose.xlu0.b32.end [16/16] 0.0, 128
        %v412 = vpop.trf.xlu0
        %v413 = vpop.trf.xlu0
        %v414 = vpop.trf.xlu0
        %v415 = vpop.trf.xlu0
        %v416 = vpop.trf.xlu0
        %v417 = vpop.trf.xlu0
        %v418 = vpop.trf.xlu0
        %v419 = vpop.trf.xlu0
        %v420 = vpop.trf.xlu0
        %v421 = vpop.trf.xlu0
        %v422 = vpop.trf.xlu0
        %v423 = vpop.trf.xlu0
        %v424 = vpop.trf.xlu0
        %v425 = vpop.trf.xlu0
        %v426 = vpop.trf.xlu0
        %v427 = vpop.trf.xlu0
        %428 = vxpose.xlu0.b32.start [1/16] %v243, 128
        %429 = vxpose.xlu0.b32.cont [2/16] %v246, 128
        %430 = vxpose.xlu0.b32.cont [3/16] %v249, 128
        %431 = vxpose.xlu0.b32.cont [4/16] %v252, 128
        %432 = vxpose.xlu0.b32.cont [5/16] %v255, 128
        %433 = vxpose.xlu0.b32.cont [6/16] %v258, 128
        %434 = vxpose.xlu0.b32.cont [7/16] %v261, 128
        %435 = vxpose.xlu0.b32.cont [8/16] %v264, 128
        %436 = vxpose.xlu0.b32.cont [9/16] %v267, 128
        %437 = vxpose.xlu0.b32.cont [10/16] 0.0, 128
        %438 = vxpose.xlu0.b32.cont [11/16] 0.0, 128
        %439 = vxpose.xlu0.b32.cont [12/16] 0.0, 128
        %440 = vxpose.xlu0.b32.cont [13/16] 0.0, 128
        %441 = vxpose.xlu0.b32.cont [14/16] 0.0, 128
        %442 = vxpose.xlu0.b32.cont [15/16] 0.0, 128
        %443 = vxpose.xlu0.b32.end [16/16] 0.0, 128
        %v444 = vpop.trf.xlu0
        %v445 = vpop.trf.xlu0
        %v446 = vpop.trf.xlu0
        %v447 = vpop.trf.xlu0
        %v448 = vpop.trf.xlu0
        %v449 = vpop.trf.xlu0
        %v450 = vpop.trf.xlu0
        %v451 = vpop.trf.xlu0
        %v452 = vpop.trf.xlu0
        %v453 = vpop.trf.xlu0
        %v454 = vpop.trf.xlu0
        %v455 = vpop.trf.xlu0
        %v456 = vpop.trf.xlu0
        %v457 = vpop.trf.xlu0
        %v458 = vpop.trf.xlu0
        %v459 = vpop.trf.xlu0
        %460 = vst [vmem:[%s190] sm:$0xff] %v284
        %vm461 = vcmask 588800
        %462 = vst.msk [vmem:[%s190 + $0x8] sm:$0xff] %vm461, %v380
        %463 = vst [vmem:[%s190 + $0x10] sm:$0xff] %v285
        %464 = vst.msk [vmem:[%s190 + $0x18] sm:$0xff] %vm461, %v381
        %465 = vst [vmem:[%s190 + $0x20] sm:$0xff] %v286
        %466 = vst.msk [vmem:[%s190 + $0x28] sm:$0xff] %vm461, %v382
        %467 = vst [vmem:[%s190 + $0x30] sm:$0xff] %v287
        %468 = vst.msk [vmem:[%s190 + $0x38] sm:$0xff] %vm461, %v383
        %469 = vst [vmem:[%s190 + $0x40] sm:$0xff] %v288
        %470 = vst.msk [vmem:[%s190 + $0x48] sm:$0xff] %vm461, %v384
        %471 = vst [vmem:[%s190 + $0x50] sm:$0xff] %v289
        %472 = vst.msk [vmem:[%s190 + $0x58] sm:$0xff] %vm461, %v385
        %473 = vst [vmem:[%s190 + $0x60] sm:$0xff] %v290
        %474 = vst.msk [vmem:[%s190 + $0x68] sm:$0xff] %vm461, %v386
        %475 = vst [vmem:[%s190 + $0x70] sm:$0xff] %v291
        %476 = vst.msk [vmem:[%s190 + $0x78] sm:$0xff] %vm461, %v387
        %477 = vst [vmem:[%s190 + $0x80] sm:$0xff] %v292
        %478 = vst.msk [vmem:[%s190 + $0x88] sm:$0xff] %vm461, %v388
        %479 = vst [vmem:[%s190 + $0x90] sm:$0xff] %v293
        %480 = vst.msk [vmem:[%s190 + $0x98] sm:$0xff] %vm461, %v389
        %481 = vst [vmem:[%s190 + $0xa0] sm:$0xff] %v294
        %482 = vst.msk [vmem:[%s190 + $0xa8] sm:$0xff] %vm461, %v390
        %483 = vst [vmem:[%s190 + $0xb0] sm:$0xff] %v295
        %484 = vst.msk [vmem:[%s190 + $0xb8] sm:$0xff] %vm461, %v391
        %485 = vst [vmem:[%s190 + $0xc0] sm:$0xff] %v296
        %486 = vst.msk [vmem:[%s190 + $0xc8] sm:$0xff] %vm461, %v392
        %487 = vst [vmem:[%s190 + $0xd0] sm:$0xff] %v297
        %488 = vst.msk [vmem:[%s190 + $0xd8] sm:$0xff] %vm461, %v393
        %489 = vst [vmem:[%s190 + $0xe0] sm:$0xff] %v298
        %490 = vst.msk [vmem:[%s190 + $0xe8] sm:$0xff] %vm461, %v394
        %491 = vst [vmem:[%s190 + $0xf0] sm:$0xff] %v299
        %492 = vst.msk [vmem:[%s190 + $0xf8] sm:$0xff] %vm461, %v395
        %493 = vst [vmem:[%s190 + $0x100] sm:$0xff] %v316
        %494 = vst.msk [vmem:[%s190 + $0x108] sm:$0xff] %vm461, %v412
        %495 = vst [vmem:[%s190 + $0x110] sm:$0xff] %v317
        %496 = vst.msk [vmem:[%s190 + $0x118] sm:$0xff] %vm461, %v413
        %497 = vst [vmem:[%s190 + $0x120] sm:$0xff] %v318
        %498 = vst.msk [vmem:[%s190 + $0x128] sm:$0xff] %vm461, %v414
        %499 = vst [vmem:[%s190 + $0x130] sm:$0xff] %v319
        %500 = vst.msk [vmem:[%s190 + $0x138] sm:$0xff] %vm461, %v415
        %501 = vst [vmem:[%s190 + $0x140] sm:$0xff] %v320
        %502 = vst.msk [vmem:[%s190 + $0x148] sm:$0xff] %vm461, %v416
        %503 = vst [vmem:[%s190 + $0x150] sm:$0xff] %v321
        %504 = vst.msk [vmem:[%s190 + $0x158] sm:$0xff] %vm461, %v417
        %505 = vst [vmem:[%s190 + $0x160] sm:$0xff] %v322
        %506 = vst.msk [vmem:[%s190 + $0x168] sm:$0xff] %vm461, %v418
        %507 = vst [vmem:[%s190 + $0x170] sm:$0xff] %v323
        %508 = vst.msk [vmem:[%s190 + $0x178] sm:$0xff] %vm461, %v419
        %509 = vst [vmem:[%s190 + $0x180] sm:$0xff] %v324
        %510 = vst.msk [vmem:[%s190 + $0x188] sm:$0xff] %vm461, %v420
        %511 = vst [vmem:[%s190 + $0x190] sm:$0xff] %v325
        %512 = vst.msk [vmem:[%s190 + $0x198] sm:$0xff] %vm461, %v421
        %513 = vst [vmem:[%s190 + $0x1a0] sm:$0xff] %v326
        %514 = vst.msk [vmem:[%s190 + $0x1a8] sm:$0xff] %vm461, %v422
        %515 = vst [vmem:[%s190 + $0x1b0] sm:$0xff] %v327
        %516 = vst.msk [vmem:[%s190 + $0x1b8] sm:$0xff] %vm461, %v423
        %517 = vst [vmem:[%s190 + $0x1c0] sm:$0xff] %v328
        %518 = vst.msk [vmem:[%s190 + $0x1c8] sm:$0xff] %vm461, %v424
        %519 = vst [vmem:[%s190 + $0x1d0] sm:$0xff] %v329
        %520 = vst.msk [vmem:[%s190 + $0x1d8] sm:$0xff] %vm461, %v425
        %521 = vst [vmem:[%s190 + $0x1e0] sm:$0xff] %v330
        %522 = vst.msk [vmem:[%s190 + $0x1e8] sm:$0xff] %vm461, %v426
        %523 = vst [vmem:[%s190 + $0x1f0] sm:$0xff] %v331
        %524 = vst.msk [vmem:[%s190 + $0x1f8] sm:$0xff] %vm461, %v427
        %525 = vst [vmem:[%s190 + $0x200] sm:$0xff] %v348
        %526 = vst.msk [vmem:[%s190 + $0x208] sm:$0xff] %vm461, %v444
        %527 = vst [vmem:[%s190 + $0x210] sm:$0xff] %v349
        %528 = vst.msk [vmem:[%s190 + $0x218] sm:$0xff] %vm461, %v445
        %529 = vst [vmem:[%s190 + $0x220] sm:$0xff] %v350
        %530 = vst.msk [vmem:[%s190 + $0x228] sm:$0xff] %vm461, %v446
        %531 = vst [vmem:[%s190 + $0x230] sm:$0xff] %v351
        %532 = vst.msk [vmem:[%s190 + $0x238] sm:$0xff] %vm461, %v447
        %533 = vst [vmem:[%s190 + $0x240] sm:$0xff] %v352
        %534 = vst.msk [vmem:[%s190 + $0x248] sm:$0xff] %vm461, %v448
        %535 = vst [vmem:[%s190 + $0x250] sm:$0xff] %v353
        %536 = vst.msk [vmem:[%s190 + $0x258] sm:$0xff] %vm461, %v449
        %537 = vst [vmem:[%s190 + $0x260] sm:$0xff] %v354
        %538 = vst.msk [vmem:[%s190 + $0x268] sm:$0xff] %vm461, %v450
        %539 = vst [vmem:[%s190 + $0x270] sm:$0xff] %v355
        %540 = vst.msk [vmem:[%s190 + $0x278] sm:$0xff] %vm461, %v451
        %541 = vst [vmem:[%s190 + $0x280] sm:$0xff] %v356
        %542 = vst.msk [vmem:[%s190 + $0x288] sm:$0xff] %vm461, %v452
        %543 = vst [vmem:[%s190 + $0x290] sm:$0xff] %v357
        %544 = vst.msk [vmem:[%s190 + $0x298] sm:$0xff] %vm461, %v453
        %545 = vst [vmem:[%s190 + $0x2a0] sm:$0xff] %v358
        %546 = vst.msk [vmem:[%s190 + $0x2a8] sm:$0xff] %vm461, %v454
        %547 = vst [vmem:[%s190 + $0x2b0] sm:$0xff] %v359
        %548 = vst.msk [vmem:[%s190 + $0x2b8] sm:$0xff] %vm461, %v455
        %549 = vst [vmem:[%s190 + $0x2c0] sm:$0xff] %v360
        %550 = vst.msk [vmem:[%s190 + $0x2c8] sm:$0xff] %vm461, %v456
        %551 = vst [vmem:[%s190 + $0x2d0] sm:$0xff] %v361
        %552 = vst.msk [vmem:[%s190 + $0x2d8] sm:$0xff] %vm461, %v457
        %553 = vst [vmem:[%s190 + $0x2e0] sm:$0xff] %v362
        %554 = vst.msk [vmem:[%s190 + $0x2e8] sm:$0xff] %vm461, %v458
        %555 = vst [vmem:[%s190 + $0x2f0] sm:$0xff] %v363
        %556 = vst.msk [vmem:[%s190 + $0x2f8] sm:$0xff] %vm461, %v459
        %s557 = smul.u32 48, %s22
        %s558 = smul.u32 2, %s21
        %p559 = scmp.lt.s32.totalorder %s20, 1
        %s560 = scalar_select %p559, %s20, 1
        %p561 = scmp.lt.s32.totalorder %s557, 47
        %s562 = scalar_select %p561, %s557, 47
        %p563 = scmp.lt.s32.totalorder %s558, 1
        %s564 = scalar_select %p563, %s558, 1
        %s565 = smul.addr %s562, 2
        %s566 = sadd.s32 %s564, %s565
        %s567 = smul.addr %s560, 96
        %s568 = sadd.s32 %s566, %s567
        %s569 = smul.addr %s568, 8
        %s570 = scalar_lea.vmem %s1, %s569
        // Predicated region
        $region29: #{tpu_custom_call.1} parent=23 // pred_check
          %p571 = pneg %p86
        $region30: #{tpu_custom_call.1} parent=23 // pred_check_branch
          %573 = sbr.rel (%p571) target = $region32
        $region31: #{tpu_custom_call.1} parent=23 // pred_region
          %s574 = smul.u32 48, %s22
          %s575 = smul.u32 2, %s21
        $region32: #{tpu_custom_call.1} parent=23 // pred_fallthru
          _
      $region24: #{tpu_custom_call.1} parent=5 // pred_fallthru
        _
      %p576 = scmp.le.s32.totalorder 2, %s10
      // Predicated region
      $region33: #{tpu_custom_call.1} parent=5 // pred_check
        %p577 = pneg %p576
      $region34: #{tpu_custom_call.1} parent=5 // pred_check_branch
        %579 = sbr.rel (%p577) target = $region36
      $region35: #{tpu_custom_call.1} parent=5 // pred_region
        %s580 = ssub.s32 %s10, 2
        // Predicated region
        $region37: #{tpu_custom_call.1} parent=35 // pred_check
          %p581 = pneg %p92
        $region38: #{tpu_custom_call.1} parent=35 // pred_check_branch
          %583 = sbr.rel (%p581) target = $region40
        $region39: #{tpu_custom_call.1} parent=35 // pred_region
          %s584 = smul.u32 48, %s25
          %s585 = smul.u32 2, %s24
          %p586 = scmp.lt.s32.totalorder %s23, 1
          %s587 = scalar_select %p586, %s23, 1
          %p588 = scmp.lt.s32.totalorder %s584, 47
          %s589 = scalar_select %p588, %s584, 47
          %p590 = scmp.lt.s32.totalorder %s585, 1
          %s591 = scalar_select %p590, %s585, 1
          %s592 = smul.addr %s589, 2
          %s593 = sadd.s32 %s591, %s592
          %s594 = smul.addr %s587, 96
          %s595 = sadd.s32 %s593, %s594
          %s596 = smul.addr %s595, 8
          %s597 = scalar_lea.vmem %s1, %s596
        $region40: #{tpu_custom_call.1} parent=35 // pred_fallthru
          _
      $region36: #{tpu_custom_call.1} parent=5 // pred_fallthru
        _
    $region6: #{tpu_custom_call.1} parent=1 // loop_footer
      %s14 = sadd.s32 1, %s10
    $region7: #{tpu_custom_call.1} parent=1 // loop_footer_branch
      %9 = sbr.rel target = $region3
    $region8: #{tpu_custom_call.1} parent=1 // loop_exit
      _
    %598 = vsyncpa [#allocation3], 1
    %s599 = scalar_lea.sflag [#allocation3], 1
    %600 = vsyncpa %s599, 1

</llo_original>
